<compile_context>
chip_gen: v7x
topology: tpu7x:2x2x1
jax: 0.10.0
libtpu: 0.0.40
codegen_flags: <defaults>
</compile_context>

<pallas_src>
import math

import jax
import jax.numpy as jnp
from jax.experimental import pallas as pl
from jax.experimental.pallas import tpu as pltpu


def _linreg_kernel(w_ref, b_ref, x_ref, o_ref):
    # w_ref / b_ref: (1,) f32 scalars in SMEM.  x_ref / o_ref: (tr, C) VMEM
    # tiles.  Compute in f32 and cast back on store (compute is fully hidden
    # behind HBM traffic, so the promotion costs nothing).
    w = w_ref[0]
    b = b_ref[0]
    o_ref[...] = (w * x_ref[...].astype(jnp.float32) + b).astype(o_ref.dtype)


def _round_up(n: int, m: int) -> int:
    return ((n + m - 1) // m) * m


def linear_regression(
    x: jax.Array,
    weight: jax.Array,
    bias: jax.Array,
    *,
    tile_bytes: int = 8 * 1024 * 1024,
    lane_width: int = 1024,
    vmem_limit_bytes: int = 48 * 1024 * 1024,
) -> jax.Array:
    """Elementwise y = w*x + b with scalar w, b, for any input shape/dtype."""
    if weight.size != 1 or bias.size != 1:
        raise ValueError("LinearRegressionModel expects scalar weight and bias "
                         f"(got weight.size={weight.size}, bias.size={bias.size})")

    orig_shape = x.shape
    n = x.size
    if n == 0:
        return x

    itemsize = jnp.dtype(x.dtype).itemsize
    # Sublane packing: 8 rows for 32-bit, 16 for 16-bit, 32 for 8-bit dtypes.
    sub = max(8, 32 // itemsize)

    # Lane-dense slab width: big multiple of 128 (clamped down for tiny inputs).
    C = min(lane_width, _round_up(n, 128))

    rows = pl.cdiv(n, C)

    # Row-tile size from the per-step byte budget, sublane-aligned.
    max_rows = max(sub, (tile_bytes // (C * itemsize) // sub) * sub)
    tr = min(max_rows, _round_up(rows, sub))

    # For inputs beyond a few MiB, force a multi-step grid (target >= 8 steps)
    # so v7x's two TensorCores both get tiles and the pipeline actually runs.
    total_bytes = rows * C * itemsize
    if total_bytes > 4 * 1024 * 1024:
        target_tr = _round_up(pl.cdiv(rows, 8), sub)
        tr = max(sub, min(tr, target_tr))

    # VMEM budget check: 2 arrays x 2 pipeline buffers per tile.
    tile_actual = tr * C * itemsize
    assert 4 * tile_actual <= vmem_limit_bytes, (
        f"tile too large for VMEM budget: 4*{tile_actual} > {vmem_limit_bytes}")

    # Pad the flattened input to whole tiles -> no partial blocks anywhere.
    rows_padded = _round_up(rows, tr)
    padded = rows_padded * C
    x_flat = x.reshape(-1)
    if padded > n:
        x_flat = jnp.pad(x_flat, (0, padded - n))
    x2 = x_flat.reshape(rows_padded, C)

    grid = (rows_padded // tr,)

    w1 = weight.reshape(1).astype(jnp.float32)
    b1 = bias.reshape(1).astype(jnp.float32)

    out2 = pl.pallas_call(
        _linreg_kernel,
        out_shape=jax.ShapeDtypeStruct((rows_padded, C), x.dtype),
        grid=grid,
        in_specs=[
            pl.BlockSpec(memory_space=pltpu.SMEM),       # weight scalar
            pl.BlockSpec(memory_space=pltpu.SMEM),       # bias scalar
            pl.BlockSpec((tr, C), lambda i: (i, 0)),     # x row-tile (VMEM)
        ],
        out_specs=pl.BlockSpec((tr, C), lambda i: (i, 0)),
        compiler_params=pltpu.CompilerParams(
            # Row tiles are independent -> megacore-shardable on v7x (2 TCs);
            # harmless no-op on single-TC v5e/v6e.
            dimension_semantics=("parallel",),
            # Explicit scoped-VMEM raise (v5e default is 16 MiB); 48 MiB keeps
            # headroom under v7x's 64 MiB/TC physical VMEM.
            vmem_limit_bytes=vmem_limit_bytes,
        ),
    )(w1, b1, x2)

    return out2.reshape(-1)[:n].reshape(orig_shape)


if __name__ == "__main__":
    key = jax.random.PRNGKey(0)
    k_w, k_b, k_x, k_x2, k_x3 = jax.random.split(key, 5)

    # nn.Parameter(torch.randn(1)) analogues.
    weight = jax.random.normal(k_w, (1,), dtype=jnp.float32)
    bias = jax.random.normal(k_b, (1,), dtype=jnp.float32)

    # Classic linear-regression input: (N, 1) column vector.  Exercises the
    # full-flatten + lane-dense repack path (last dim 1 would otherwise force
    # masked partial stores).
    x = jax.random.normal(k_x, (64, 1), dtype=jnp.float32)
    y = jax.block_until_ready(linear_regression(x, weight, bias))
    y_ref = weight[0] * x + bias[0]
    assert y.shape == x.shape and y.dtype == x.dtype
    assert jnp.allclose(y, y_ref, atol=1e-6, rtol=1e-6)

    # Larger input with an awkward (non-128-multiple) trailing dim and a tiny
    # tile budget to exercise the padded, multi-step (grid > 1) pipelined path.
    x_big = jax.random.normal(k_x2, (256, 257), dtype=jnp.float32)
    y_big = jax.block_until_ready(
        linear_regression(x_big, weight, bias, tile_bytes=64 * 1024))
    y_big_ref = weight[0] * x_big + bias[0]
    assert y_big.shape == x_big.shape and y_big.dtype == x_big.dtype
    assert jnp.allclose(y_big, y_big_ref, atol=1e-6, rtol=1e-6)

    # bf16 input: exercises dtype-aware sublane alignment (16-row tiles) and
    # the f32-promote / cast-back path.
    x_bf16 = jax.random.normal(k_x3, (33, 100), dtype=jnp.float32).astype(jnp.bfloat16)
    y_bf16 = jax.block_until_ready(linear_regression(x_bf16, weight, bias))
    y_bf16_ref = (weight[0] * x_bf16.astype(jnp.float32) + bias[0]).astype(jnp.bfloat16)
    assert y_bf16.shape == x_bf16.shape and y_bf16.dtype == x_bf16.dtype
    assert jnp.allclose(y_bf16.astype(jnp.float32),
                        y_bf16_ref.astype(jnp.float32), atol=2e-2, rtol=2e-2)

    print("KERNEL_OK")
</pallas_src>

<mosaic_0001>
module attributes {stable_mosaic.version = 11 : i64} {
  func.func @_linreg_kernel(%arg0: i32, %arg1: memref<1xf32, #tpu.memory_space<smem>>, %arg2: memref<1xf32, #tpu.memory_space<smem>>, %arg3: memref<8x128xf32, #tpu.memory_space<vmem>>, %arg4: memref<8x128xf32, #tpu.memory_space<vmem>>) attributes {dimension_semantics = [#tpu.dimension_semantics<parallel>], iteration_bounds = array<i64: 1>, scalar_prefetch = 0 : i64, scratch_operands = 0 : i64, tpu.core_type = #tpu.core_type<tc>, window_params = [{transform_indices = @transform_0, window_bounds = array<i64: 1>}, {transform_indices = @transform_1, window_bounds = array<i64: 1>}, {transform_indices = @transform_2, window_bounds = array<i64: 8, 128>}, {transform_indices = @transform_3, window_bounds = array<i64: 8, 128>}]} {
    %c0 = arith.constant 0 : index
    %0 = memref.load %arg1[%c0] : memref<1xf32, #tpu.memory_space<smem>>
    %c0_0 = arith.constant 0 : index
    %1 = memref.load %arg2[%c0_0] : memref<1xf32, #tpu.memory_space<smem>>
    %c0_1 = arith.constant 0 : index
    %c0_2 = arith.constant 0 : index
    %2 = vector.load %arg3[%c0_1, %c0_2] : memref<8x128xf32, #tpu.memory_space<vmem>>, vector<8x128xf32>
    %3 = vector.broadcast %0 : f32 to vector<8x128xf32>
    %4 = arith.mulf %3, %2 : vector<8x128xf32>
    %5 = vector.broadcast %1 : f32 to vector<8x128xf32>
    %6 = arith.addf %4, %5 : vector<8x128xf32>
    %c0_3 = arith.constant 0 : index
    %c0_4 = arith.constant 0 : index
    %7 = vector.load %arg4[%c0_3, %c0_4] : memref<8x128xf32, #tpu.memory_space<vmem>>, vector<8x128xf32>
    tpu.vector_store %arg4[%c0_3, %c0_4], %6 {strides = array<i32>} : memref<8x128xf32, #tpu.memory_space<vmem>>, vector<8x128xf32>,
    return
  }
  func.func @transform_0(%arg0: i32) -> i32 {
    %c0_i32 = arith.constant 0 : i32
    %c0_i32_0 = arith.constant 0 : i32
    return %c0_i32 : i32
  }
  func.func @transform_1(%arg0: i32) -> i32 {
    %c0_i32 = arith.constant 0 : i32
    %c0_i32_0 = arith.constant 0 : i32
    return %c0_i32 : i32
  }
  func.func @transform_2(%arg0: i32) -> (i32, i32) {
    %c0_i32 = arith.constant 0 : i32
    %c0_i32_0 = arith.constant 0 : i32
    return %arg0, %c0_i32 : i32, i32
  }
  func.func @transform_3(%arg0: i32) -> (i32, i32) {
    %c0_i32 = arith.constant 0 : i32
    %c0_i32_0 = arith.constant 0 : i32
    return %arg0, %c0_i32 : i32, i32
  }
}

</mosaic_0001>

<llo_original>
// kernel: tpu_custom_call.1
$region0: #{tpu_custom_call.1}
  #allocation0 [shape = 'u32[]', space=smem, size = 0x4, offset = 0x4, fixed_abs, tag = 'smem constant byte address 0x4 - core index']
  #allocation1 [shape = 'u32[144,128]{1,0:T(1,128)}', space=vmem, size = 0x12000, scoped, tag = 'internal scratch']
  #allocation2 [shape = 'f32[1]{0:T(128)S(6)}', space=smem, size = 0x200, scoped, tag = 'scoped memory for tpu_custom_call.1']
  #allocation3 [shape = 'f32[1]{0:T(128)S(6)}', space=smem, size = 0x200, scoped, tag = 'scoped memory for tpu_custom_call.1']
  %s0 = inlined_call_operand.<no memory space> [shape: f32[1], index: 0, kind: input, shape index: {}]
  %s1 = inlined_call_operand.<no memory space> [shape: f32[1], index: 1, kind: input, shape index: {}]
  %s2 = inlined_call_operand.hbm [shape: f32[8,128], index: 2, kind: input, shape index: {}]
  %s3 = inlined_call_operand.hbm [shape: f32[8,128], index: 3, kind: output, shape index: {}]
  %s4 = sld [smem:[#allocation0]]
  $region26: #{tpu_custom_call.1} parent=0
    _
  %s6 = ssub.s32 1, %s4
  %s7 = scalar_select 0, %s6, %s4
  %8 = sst [smem:[#allocation2]] %s0
  %9 = sst [smem:[#allocation3]] %s1
  $region1: #{tpu_custom_call.1} parent=0
    #allocation4 [shape = 'u8[4096]{0}', space=vmem, size = 0x1000, scoped, tag = 'input window, operand 2, single buffered']
    #allocation5 [shape = 's32[1]{0}', space=sflag, size = 0x4, scoped, tag = 'scoped memory for tpu_custom_call.1']
    #allocation6 [shape = 's32[1]{0}', space=sflag, size = 0x4, scoped, tag = 'scoped memory for tpu_custom_call.1']
    #allocation7 [shape = 'u8[4096]{0}', space=vmem, size = 0x1000, scoped, tag = 'output window, operand 0, single buffered']
    %10 = vsyncpa [#allocation5], 0
    %11 = vsyncpa [#allocation6], 0
    // Predicated region
    $region2: #{tpu_custom_call.1} parent=1 // pred_check
      _
    $region3: #{tpu_custom_call.1} parent=1 // pred_check_branch
      %13 = sbr.rel (0) target = $region5
    $region4: #{tpu_custom_call.1} parent=1 // pred_region
      _
    $region5: #{tpu_custom_call.1} parent=1 // pred_fallthru
      _
    // Predicated region
    $region6: #{tpu_custom_call.1} parent=1 // pred_check
      _
    $region7: #{tpu_custom_call.1} parent=1 // pred_check_branch
      %15 = sbr.rel (0) target = $region9
    $region8: #{tpu_custom_call.1} parent=1 // pred_region
      _
    $region9: #{tpu_custom_call.1} parent=1 // pred_fallthru
      _
    // Predicated region
    $region10: #{tpu_custom_call.1} parent=1 // pred_check
      _
    $region11: #{tpu_custom_call.1} parent=1 // pred_check_branch
      %17 = sbr.rel (0) target = $region13
    $region12: #{tpu_custom_call.1} parent=1 // pred_region
      %s19 = ssub.s32 128, 128
      %20 = vsyncadd [#allocation5], %s19
      %s22 = sshll.u32 [#allocation4], 4
      %s23 = int_to_ptr.vmem [resolvable:$true] %s22
      %25 = dma.hbm_to_vmem [thread:$0]  %s2, 128, %s23, [#allocation5]
    $region13: #{tpu_custom_call.1} parent=1 // pred_fallthru
      _
    // Predicated region
    $region14: #{tpu_custom_call.1} parent=1 // pred_check
      _
    $region15: #{tpu_custom_call.1} parent=1 // pred_check_branch
      %27 = sbr.rel (0) target = $region17
    $region16: #{tpu_custom_call.1} parent=1 // pred_region
      %28 = dma.done [#allocation5], 128
    $region17: #{tpu_custom_call.1} parent=1 // pred_fallthru
      _
    %s29 = sld [smem:[#allocation2]]
    %s30 = sld [smem:[#allocation3]]
    %v31 = vld [vmem:[#allocation4] sm:$0xff]
    %v32 = vstv %s29
    %v33 = vmul.f32 %v32, %v31
    %v34 = vstv %s30
    %v35 = vadd.f32 %v33, %v34
    %36 = vst [vmem:[#allocation7] sm:$0xff] %v35
    // Predicated region
    $region18: #{tpu_custom_call.1} parent=1 // pred_check
      _
    $region19: #{tpu_custom_call.1} parent=1 // pred_check_branch
      %38 = sbr.rel (0) target = $region21
    $region20: #{tpu_custom_call.1} parent=1 // pred_region
      %s40 = ssub.s32 128, 128
      %41 = vsyncadd [#allocation6], %s40
      %s43 = sshll.u32 [#allocation7], 4
      %s44 = int_to_ptr.vmem [resolvable:$true] %s43
      %46 = dma.vmem_to_hbm [thread:$0]  %s44, 128, %s3, [#allocation6]
    $region21: #{tpu_custom_call.1} parent=1 // pred_fallthru
      _
    // Predicated region
    $region22: #{tpu_custom_call.1} parent=1 // pred_check
      _
    $region23: #{tpu_custom_call.1} parent=1 // pred_check_branch
      %48 = sbr.rel (0) target = $region25
    $region24: #{tpu_custom_call.1} parent=1 // pred_region
      %49 = dma.done [#allocation6], 128
    $region25: #{tpu_custom_call.1} parent=1 // pred_fallthru
      _
    %50 = vsyncpa [#allocation5], 1
    %51 = vsyncpa [#allocation6], 1

</llo_original>
